<compile_context>
chip_gen: v5e
topology: v5e:2x2
jax: 0.10.0
libtpu: 0.0.40
codegen_flags: <defaults>
</compile_context>

<pallas_src>
import jax
import jax.numpy as jnp
from jax.experimental import pallas as pl
from jax.experimental.pallas import tpu as pltpu


def generator_kernel(x_ref, w1_ref, b1_ref, w2_ref, b2_ref, o_ref):
    # Layer 1: x @ W1 + b1, ReLU.  bf16 operands, f32 MXU accumulation.
    h = jnp.dot(x_ref[...], w1_ref[...], preferred_element_type=jnp.float32)
    h = jnp.maximum(h + b1_ref[...], 0.0)          # (1, h_dim) bias broadcasts

    # Layer 2: h @ W2 + b2 (h downcast to the weight dtype for the MXU).
    out = jnp.dot(h.astype(w2_ref.dtype), w2_ref[...],
                  preferred_element_type=jnp.float32)
    o_ref[...] = (out + b2_ref[...]).astype(o_ref.dtype)


def generator_forward(noise, att, w1, b1, w2, b2, *,
                      block_batch=256, out_dtype=jnp.float32):
    """cat([noise, att], 1) -> Linear -> ReLU -> Linear, fused on TPU."""
    batch = noise.shape[0]
    in_dim = noise.shape[1] + att.shape[1]
    h_dim = w1.shape[1]
    f_dim = w2.shape[1]
    assert w1.shape[0] == in_dim and w2.shape[0] == h_dim

    compute_dtype = w1.dtype
    # One-time, lane-dense packing of the concatenated input (fuses torch.cat
    # into a single K=in_dim contraction inside the kernel).
    x = jnp.concatenate([noise.astype(compute_dtype),
                         att.astype(compute_dtype)], axis=1)

    # Tile the batch axis.  Round the tile to a sublane multiple and pad the
    # batch to a whole number of tiles so ragged batches are legal.
    tb = min(block_batch, batch)
    tb = ((tb + 7) // 8) * 8
    n_steps = pl.cdiv(batch, tb)
    padded_batch = n_steps * tb
    if padded_batch != batch:
        x = jnp.pad(x, ((0, padded_batch - batch), (0, 0)))

    grid = (n_steps,)
    in_specs = [
        pl.BlockSpec((tb, in_dim), lambda i: (i, 0)),     # x: batch-tiled
        pl.BlockSpec((in_dim, h_dim), lambda i: (0, 0)),  # W1 (VMEM-pinned)
        pl.BlockSpec((1, h_dim), lambda i: (0, 0)),       # b1 (VMEM-pinned)
        pl.BlockSpec((h_dim, f_dim), lambda i: (0, 0)),   # W2 (VMEM-pinned)
        pl.BlockSpec((1, f_dim), lambda i: (0, 0)),       # b2 (VMEM-pinned)
    ]
    out_specs = pl.BlockSpec((tb, f_dim), lambda i: (i, 0))

    flops = 2 * padded_batch * (in_dim * h_dim + h_dim * f_dim)
    bytes_accessed = (
        x.size * x.dtype.itemsize
        + w1.size * w1.dtype.itemsize + b1.size * b1.dtype.itemsize
        + w2.size * w2.dtype.itemsize + b2.size * b2.dtype.itemsize
        + padded_batch * f_dim * jnp.dtype(out_dtype).itemsize
    )

    out = pl.pallas_call(
        generator_kernel,
        out_shape=jax.ShapeDtypeStruct((padded_batch, f_dim), out_dtype),
        grid=grid,
        in_specs=in_specs,
        out_specs=out_specs,
        compiler_params=pltpu.CompilerParams(
            dimension_semantics=("parallel",)),
        cost_estimate=pl.CostEstimate(
            flops=flops, transcendentals=0, bytes_accessed=bytes_accessed),
    )(x, w1, b1, w2, b2)

    if padded_batch != batch:
        out = out[:batch]
    return out


def init_params(key, nz, atts_dim, h_dim, f_dim, dtype=jnp.bfloat16):
    # weights_init: Linear weights ~ N(0, 0.02), biases = 0.
    # PyTorch nn.Linear stores W as (out, in) and applies x @ W.T; we generate
    # the equivalent (in, out) matrices directly.
    k1, k2 = jax.random.split(key)
    in_dim = nz + atts_dim
    w1 = (0.02 * jax.random.normal(k1, (in_dim, h_dim), jnp.float32)).astype(dtype)
    w2 = (0.02 * jax.random.normal(k2, (h_dim, f_dim), jnp.float32)).astype(dtype)
    b1 = jnp.zeros((1, h_dim), dtype=jnp.float32)
    b2 = jnp.zeros((1, f_dim), dtype=jnp.float32)
    return w1, b1, w2, b2


def generator_reference(noise, att, w1, b1, w2, b2):
    # Same bf16-in / f32-accumulate path as the kernel.
    x = jnp.concatenate([noise.astype(w1.dtype), att.astype(w1.dtype)], axis=1)
    h = jnp.dot(x, w1, preferred_element_type=jnp.float32)
    h = jnp.maximum(h + b1, 0.0)
    return jnp.dot(h.astype(w2.dtype), w2,
                   preferred_element_type=jnp.float32) + b2


if __name__ == "__main__":
    # MXU / lane-aligned shapes: in_dim = nz + atts_dim = 128, h_dim = f_dim
    # = 128, batch = 256 -> a single 256-row grid step (fills the 256-row MXU
    # on v6e/v7x and eliminates per-step overhead on single-TC chips).
    batch, nz, atts_dim, h_dim, f_dim = 256, 64, 64, 128, 128

    key = jax.random.PRNGKey(0)
    kn, ka, kp = jax.random.split(key, 3)
    noise = jax.random.normal(kn, (batch, nz), jnp.float32).astype(jnp.bfloat16)
    att = jax.random.normal(ka, (batch, atts_dim), jnp.float32).astype(jnp.bfloat16)
    w1, b1, w2, b2 = init_params(kp, nz, atts_dim, h_dim, f_dim)

    out = generator_forward(noise, att, w1, b1, w2, b2, block_batch=256)
    out = jax.block_until_ready(out)

    ref = generator_reference(noise, att, w1, b1, w2, b2)
    assert out.shape == (batch, f_dim)
    assert out.dtype == jnp.float32
    max_err = float(jnp.max(jnp.abs(out - ref)))
    assert jnp.allclose(out, ref, atol=2e-3, rtol=2e-3), f"max abs err {max_err}"

    print("KERNEL_OK")
</pallas_src>

<mosaic_0001>
module attributes {stable_mosaic.version = 11 : i64} {
  func.func @generator_kernel(%arg0: i32, %arg1: memref<256x128xbf16, #tpu.memory_space<vmem>>, %arg2: memref<128x128xbf16, #tpu.memory_space<vmem>>, %arg3: memref<1x128xf32, #tpu.memory_space<vmem>>, %arg4: memref<128x128xbf16, #tpu.memory_space<vmem>>, %arg5: memref<1x128xf32, #tpu.memory_space<vmem>>, %arg6: memref<256x128xf32, #tpu.memory_space<vmem>>) attributes {dimension_semantics = [#tpu.dimension_semantics<parallel>], iteration_bounds = array<i64: 1>, scalar_prefetch = 0 : i64, scratch_operands = 0 : i64, tpu.core_type = #tpu.core_type<tc>, window_params = [{transform_indices = @transform_0, window_bounds = array<i64: 256, 128>}, {pipeline_mode = #tpu.pipeline_mode<synchronous>, transform_indices = @transform_1, window_bounds = array<i64: 128, 128>}, {pipeline_mode = #tpu.pipeline_mode<synchronous>, transform_indices = @transform_2, window_bounds = array<i64: 1, 128>}, {pipeline_mode = #tpu.pipeline_mode<synchronous>, transform_indices = @transform_3, window_bounds = array<i64: 128, 128>}, {pipeline_mode = #tpu.pipeline_mode<synchronous>, transform_indices = @transform_4, window_bounds = array<i64: 1, 128>}, {transform_indices = @transform_5, window_bounds = array<i64: 256, 128>}]} {
    %c0 = arith.constant 0 : index
    %c0_0 = arith.constant 0 : index
    %0 = vector.load %arg1[%c0, %c0_0] : memref<256x128xbf16, #tpu.memory_space<vmem>>, vector<256x128xbf16>
    %c0_1 = arith.constant 0 : index
    %c0_2 = arith.constant 0 : index
    %1 = vector.load %arg2[%c0_1, %c0_2] : memref<128x128xbf16, #tpu.memory_space<vmem>>, vector<128x128xbf16>
    %cst = arith.constant dense<0.000000e+00> : vector<256x128xf32>
    %2 = tpu.matmul %0, %1, %cst {dimension_numbers = #tpu.dot_dimension_numbers<[1], [0], [0], [1], [0, 0, 1, 1], [], []>} : vector<256x128xbf16>, vector<128x128xbf16>, vector<256x128xf32> -> vector<256x128xf32>
    %c0_3 = arith.constant 0 : index
    %c0_4 = arith.constant 0 : index
    %3 = vector.load %arg3[%c0_3, %c0_4] : memref<1x128xf32, #tpu.memory_space<vmem>>, vector<1x128xf32>
    %4 = vector.broadcast %3 : vector<1x128xf32> to vector<256x128xf32>
    %5 = arith.addf %2, %4 : vector<256x128xf32>
    %cst_5 = arith.constant 0.000000e+00 : f32
    %6 = vector.broadcast %cst_5 : f32 to vector<256x128xf32>
    %7 = arith.maximumf %5, %6 : vector<256x128xf32>
    %8 = arith.truncf %7 : vector<256x128xf32> to vector<256x128xbf16>
    %c0_6 = arith.constant 0 : index
    %c0_7 = arith.constant 0 : index
    %9 = vector.load %arg4[%c0_6, %c0_7] : memref<128x128xbf16, #tpu.memory_space<vmem>>, vector<128x128xbf16>
    %cst_8 = arith.constant dense<0.000000e+00> : vector<256x128xf32>
    %10 = tpu.matmul %8, %9, %cst_8 {dimension_numbers = #tpu.dot_dimension_numbers<[1], [0], [0], [1], [0, 0, 1, 1], [], []>} : vector<256x128xbf16>, vector<128x128xbf16>, vector<256x128xf32> -> vector<256x128xf32>
    %c0_9 = arith.constant 0 : index
    %c0_10 = arith.constant 0 : index
    %11 = vector.load %arg5[%c0_9, %c0_10] : memref<1x128xf32, #tpu.memory_space<vmem>>, vector<1x128xf32>
    %12 = vector.broadcast %11 : vector<1x128xf32> to vector<256x128xf32>
    %13 = arith.addf %10, %12 : vector<256x128xf32>
    %c0_11 = arith.constant 0 : index
    %c0_12 = arith.constant 0 : index
    %14 = vector.load %arg6[%c0_11, %c0_12] : memref<256x128xf32, #tpu.memory_space<vmem>>, vector<256x128xf32>
    tpu.vector_store %arg6[%c0_11, %c0_12], %13 {strides = array<i32>} : memref<256x128xf32, #tpu.memory_space<vmem>>, vector<256x128xf32>,
    return
  }
  func.func @transform_0(%arg0: i32) -> (i32, i32) {
    %c0_i32 = arith.constant 0 : i32
    %c0_i32_0 = arith.constant 0 : i32
    return %arg0, %c0_i32 : i32, i32
  }
  func.func @transform_1(%arg0: i32) -> (i32, i32) {
    %c0_i32 = arith.constant 0 : i32
    %c0_i32_0 = arith.constant 0 : i32
    %c0_i32_1 = arith.constant 0 : i32
    return %c0_i32, %c0_i32_0 : i32, i32
  }
  func.func @transform_2(%arg0: i32) -> (i32, i32) {
    %c0_i32 = arith.constant 0 : i32
    %c0_i32_0 = arith.constant 0 : i32
    %c0_i32_1 = arith.constant 0 : i32
    return %c0_i32, %c0_i32_0 : i32, i32
  }
  func.func @transform_3(%arg0: i32) -> (i32, i32) {
    %c0_i32 = arith.constant 0 : i32
    %c0_i32_0 = arith.constant 0 : i32
    %c0_i32_1 = arith.constant 0 : i32
    return %c0_i32, %c0_i32_0 : i32, i32
  }
  func.func @transform_4(%arg0: i32) -> (i32, i32) {
    %c0_i32 = arith.constant 0 : i32
    %c0_i32_0 = arith.constant 0 : i32
    %c0_i32_1 = arith.constant 0 : i32
    return %c0_i32, %c0_i32_0 : i32, i32
  }
  func.func @transform_5(%arg0: i32) -> (i32, i32) {
    %c0_i32 = arith.constant 0 : i32
    %c0_i32_0 = arith.constant 0 : i32
    return %arg0, %c0_i32 : i32, i32
  }
}

</mosaic_0001>

<llo_original>
// kernel: tpu_custom_call.1
$region0: #{tpu_custom_call.1}
  #allocation0 [shape = 'u32[]', space=smem, size = 0x4, offset = 0x4, fixed_abs, tag = 'smem constant byte address 0x4 - core index']
  #allocation1 [shape = 'u32[72,128]{1,0:T(1,128)}', space=vmem, size = 0x9000, scoped, tag = 'internal scratch']
  %s0 = inlined_call_operand.hbm [shape: bf16[256,128], index: 0, kind: input, shape index: {}]
  %s1 = inlined_call_operand.hbm [shape: bf16[128,128], index: 1, kind: input, shape index: {}]
  %s2 = inlined_call_operand.vmem [shape: f32[1,128], index: 2, kind: input, shape index: {}]
  %s3 = inlined_call_operand.hbm [shape: bf16[128,128], index: 3, kind: input, shape index: {}]
  %s4 = inlined_call_operand.vmem [shape: f32[1,128], index: 4, kind: input, shape index: {}]
  %s5 = inlined_call_operand.hbm [shape: f32[256,128], index: 5, kind: output, shape index: {}]
  %s6 = sld [smem:[#allocation0]]
  $region42: #{tpu_custom_call.1} parent=0
    _
  %s8 = ssub.s32 1, %s6
  %s9 = scalar_select 0, %s8, %s6
  $region1: #{tpu_custom_call.1} parent=0
    #allocation2 [shape = 'u8[65536]{0}', space=vmem, size = 0x10000, scoped, tag = 'input window, operand 0, single buffered']
    #allocation3 [shape = 's32[1]{0}', space=sflag, size = 0x4, scoped, tag = 'scoped memory for tpu_custom_call.1']
    #allocation4 [shape = 's32[1]{0}', space=sflag, size = 0x4, scoped, tag = 'scoped memory for tpu_custom_call.1']
    #allocation5 [shape = 'u8[32768]{0}', space=vmem, size = 0x8000, scoped, tag = 'input window, operand 1, single buffered']
    #allocation6 [shape = 's32[1]{0}', space=sflag, size = 0x4, scoped, tag = 'scoped memory for tpu_custom_call.1']
    #allocation7 [shape = 'u8[32768]{0}', space=vmem, size = 0x8000, scoped, tag = 'input window, operand 3, single buffered']
    #allocation8 [shape = 'u8[131072]{0}', space=vmem, size = 0x20000, scoped, tag = 'output window, operand 0, single buffered']
    %10 = vsyncpa [#allocation3], 0
    %11 = vsyncpa [#allocation6], 0
    %12 = vsyncpa [#allocation4], 0
    // Predicated region
    $region2: #{tpu_custom_call.1} parent=1 // pred_check
      _
    $region3: #{tpu_custom_call.1} parent=1 // pred_check_branch
      %14 = sbr.rel (0) target = $region5
    $region4: #{tpu_custom_call.1} parent=1 // pred_region
      %16 = vsyncadd [#allocation3], 0
      %s17 = sshll.u32 %s0, 4
      %s18 = int_to_ptr.hbm [resolvable:$true] %s17
      %s19 = sshll.u32 [#allocation2], 4
      %s20 = int_to_ptr.vmem [resolvable:$true] %s19
      %25 = dma.hbm_to_vmem [thread:$0]  %s18, 2048, %s20, [#allocation3], 64, 64, 4
    $region5: #{tpu_custom_call.1} parent=1 // pred_fallthru
      _
    // Predicated region
    $region6: #{tpu_custom_call.1} parent=1 // pred_check
      _
    $region7: #{tpu_custom_call.1} parent=1 // pred_check_branch
      %27 = sbr.rel (0) target = $region9
    $region8: #{tpu_custom_call.1} parent=1 // pred_region
      %29 = vsyncadd [#allocation6], 0
      %s30 = sshll.u32 %s1, 4
      %s31 = int_to_ptr.hbm [resolvable:$true] %s30
      %s32 = sshll.u32 [#allocation5], 4
      %s33 = int_to_ptr.vmem [resolvable:$true] %s32
      %38 = dma.hbm_to_vmem [thread:$0]  %s31, 1024, %s33, [#allocation6], 64, 64, 4
    $region9: #{tpu_custom_call.1} parent=1 // pred_fallthru
      _
    // Predicated region
    $region10: #{tpu_custom_call.1} parent=1 // pred_check
      _
    $region11: #{tpu_custom_call.1} parent=1 // pred_check_branch
      %40 = sbr.rel (0) target = $region13
    $region12: #{tpu_custom_call.1} parent=1 // pred_region
      _
    $region13: #{tpu_custom_call.1} parent=1 // pred_fallthru
      _
    // Predicated region
    $region14: #{tpu_custom_call.1} parent=1 // pred_check
      _
    $region15: #{tpu_custom_call.1} parent=1 // pred_check_branch
      %42 = sbr.rel (0) target = $region17
    $region16: #{tpu_custom_call.1} parent=1 // pred_region
      %44 = vsyncadd [#allocation6], 0
      %s45 = sshll.u32 %s3, 4
      %s46 = int_to_ptr.hbm [resolvable:$true] %s45
      %s47 = sshll.u32 [#allocation7], 4
      %s48 = int_to_ptr.vmem [resolvable:$true] %s47
      %53 = dma.hbm_to_vmem [thread:$0]  %s46, 1024, %s48, [#allocation6], 64, 64, 4
    $region17: #{tpu_custom_call.1} parent=1 // pred_fallthru
      _
    // Predicated region
    $region18: #{tpu_custom_call.1} parent=1 // pred_check
      _
    $region19: #{tpu_custom_call.1} parent=1 // pred_check_branch
      %55 = sbr.rel (0) target = $region21
    $region20: #{tpu_custom_call.1} parent=1 // pred_region
      _
    $region21: #{tpu_custom_call.1} parent=1 // pred_fallthru
      _
    // Predicated region
    $region22: #{tpu_custom_call.1} parent=1 // pred_check
      _
    $region23: #{tpu_custom_call.1} parent=1 // pred_check_branch
      %57 = sbr.rel (0) target = $region25
    $region24: #{tpu_custom_call.1} parent=1 // pred_region
      %59 = dma.done [#allocation3], 2048
    $region25: #{tpu_custom_call.1} parent=1 // pred_fallthru
      _
    // Predicated region
    $region26: #{tpu_custom_call.1} parent=1 // pred_check
      _
    $region27: #{tpu_custom_call.1} parent=1 // pred_check_branch
      %61 = sbr.rel (0) target = $region29
    $region28: #{tpu_custom_call.1} parent=1 // pred_region
      %63 = dma.done [#allocation6], 1024
    $region29: #{tpu_custom_call.1} parent=1 // pred_fallthru
      _
    // Predicated region
    $region30: #{tpu_custom_call.1} parent=1 // pred_check
      _
    $region31: #{tpu_custom_call.1} parent=1 // pred_check_branch
      %65 = sbr.rel (0) target = $region33
    $region32: #{tpu_custom_call.1} parent=1 // pred_region
      %67 = dma.done [#allocation6], 1024
    $region33: #{tpu_custom_call.1} parent=1 // pred_fallthru
      _
    %v68 = vld [vmem:[#allocation2] sm:$0xf]
    %v69 = vld [vmem:[#allocation2 + $0x4] sm:$0xf]
    %v70 = vld [vmem:[#allocation2 + $0x8] sm:$0xf]
    %v71 = vld [vmem:[#allocation2 + $0xc] sm:$0xf]
    %v72 = vld [vmem:[#allocation2 + $0x10] sm:$0xf]
    %v73 = vld [vmem:[#allocation2 + $0x14] sm:$0xf]
    %v74 = vld [vmem:[#allocation2 + $0x18] sm:$0xf]
    %v75 = vld [vmem:[#allocation2 + $0x1c] sm:$0xf]
    %v76 = vld [vmem:[#allocation2 + $0x20] sm:$0xf]
    %v77 = vld [vmem:[#allocation2 + $0x24] sm:$0xf]
    %v78 = vld [vmem:[#allocation2 + $0x28] sm:$0xf]
    %v79 = vld [vmem:[#allocation2 + $0x2c] sm:$0xf]
    %v80 = vld [vmem:[#allocation2 + $0x30] sm:$0xf]
    %v81 = vld [vmem:[#allocation2 + $0x34] sm:$0xf]
    %v82 = vld [vmem:[#allocation2 + $0x38] sm:$0xf]
    %v83 = vld [vmem:[#allocation2 + $0x3c] sm:$0xf]
    %v84 = vld [vmem:[#allocation2 + $0x40] sm:$0xf]
    %v85 = vld [vmem:[#allocation2 + $0x44] sm:$0xf]
    %v86 = vld [vmem:[#allocation2 + $0x48] sm:$0xf]
    %v87 = vld [vmem:[#allocation2 + $0x4c] sm:$0xf]
    %v88 = vld [vmem:[#allocation2 + $0x50] sm:$0xf]
    %v89 = vld [vmem:[#allocation2 + $0x54] sm:$0xf]
    %v90 = vld [vmem:[#allocation2 + $0x58] sm:$0xf]
    %v91 = vld [vmem:[#allocation2 + $0x5c] sm:$0xf]
    %v92 = vld [vmem:[#allocation2 + $0x60] sm:$0xf]
    %v93 = vld [vmem:[#allocation2 + $0x64] sm:$0xf]
    %v94 = vld [vmem:[#allocation2 + $0x68] sm:$0xf]
    %v95 = vld [vmem:[#allocation2 + $0x6c] sm:$0xf]
    %v96 = vld [vmem:[#allocation2 + $0x70] sm:$0xf]
    %v97 = vld [vmem:[#allocation2 + $0x74] sm:$0xf]
    %v98 = vld [vmem:[#allocation2 + $0x78] sm:$0xf]
    %v99 = vld [vmem:[#allocation2 + $0x7c] sm:$0xf]
    %v100 = vld [vmem:[#allocation5] sm:$0xf]
    %v101 = vld [vmem:[#allocation5 + $0x4] sm:$0xf]
    %v102 = vld [vmem:[#allocation5 + $0x8] sm:$0xf]
    %v103 = vld [vmem:[#allocation5 + $0xc] sm:$0xf]
    %v104 = vld [vmem:[#allocation5 + $0x10] sm:$0xf]
    %v105 = vld [vmem:[#allocation5 + $0x14] sm:$0xf]
    %v106 = vld [vmem:[#allocation5 + $0x18] sm:$0xf]
    %v107 = vld [vmem:[#allocation5 + $0x1c] sm:$0xf]
    %v108 = vld [vmem:[#allocation5 + $0x20] sm:$0xf]
    %v109 = vld [vmem:[#allocation5 + $0x24] sm:$0xf]
    %v110 = vld [vmem:[#allocation5 + $0x28] sm:$0xf]
    %v111 = vld [vmem:[#allocation5 + $0x2c] sm:$0xf]
    %v112 = vld [vmem:[#allocation5 + $0x30] sm:$0xf]
    %v113 = vld [vmem:[#allocation5 + $0x34] sm:$0xf]
    %v114 = vld [vmem:[#allocation5 + $0x38] sm:$0xf]
    %v115 = vld [vmem:[#allocation5 + $0x3c] sm:$0xf]
    %v116 = vld [vmem:[%s2] sm:$0x1]
    %v118 = vperm.slane %v116, 0
    %v152 = vunpack.c.l.b16 %v68
    %v153 = vunpack.c.l.b16 %v69
    %v154 = vunpack.c.l.b16 %v70
    %v155 = vunpack.c.l.b16 %v71
    %v156 = vunpack.c.l.b16 %v72
    %v157 = vunpack.c.l.b16 %v73
    %v158 = vunpack.c.l.b16 %v74
    %v159 = vunpack.c.l.b16 %v75
    %v160 = vunpack.c.l.b16 %v76
    %v161 = vunpack.c.l.b16 %v77
    %v162 = vunpack.c.l.b16 %v78
    %v163 = vunpack.c.l.b16 %v79
    %v164 = vunpack.c.l.b16 %v80
    %v165 = vunpack.c.l.b16 %v81
    %v166 = vunpack.c.l.b16 %v82
    %v167 = vunpack.c.l.b16 %v83
    %v168 = vunpack.c.l.b16 %v84
    %v169 = vunpack.c.l.b16 %v85
    %v170 = vunpack.c.l.b16 %v86
    %v171 = vunpack.c.l.b16 %v87
    %v172 = vunpack.c.l.b16 %v88
    %v173 = vunpack.c.l.b16 %v89
    %v174 = vunpack.c.l.b16 %v90
    %v175 = vunpack.c.l.b16 %v91
    %v176 = vunpack.c.l.b16 %v92
    %v177 = vunpack.c.l.b16 %v93
    %v178 = vunpack.c.l.b16 %v94
    %v179 = vunpack.c.l.b16 %v95
    %v180 = vunpack.c.l.b16 %v96
    %v181 = vunpack.c.l.b16 %v97
    %v182 = vunpack.c.l.b16 %v98
    %v183 = vunpack.c.l.b16 %v99
    %v184 = vpack.c.b16 %v153, %v152
    %v185 = vpack.c.b16 %v155, %v154
    %v186 = vpack.c.b16 %v157, %v156
    %v187 = vpack.c.b16 %v159, %v158
    %v188 = vpack.c.b16 %v161, %v160
    %v189 = vpack.c.b16 %v163, %v162
    %v190 = vpack.c.b16 %v165, %v164
    %v191 = vpack.c.b16 %v167, %v166
    %v192 = vpack.c.b16 %v169, %v168
    %v193 = vpack.c.b16 %v171, %v170
    %v194 = vpack.c.b16 %v173, %v172
    %v195 = vpack.c.b16 %v175, %v174
    %v196 = vpack.c.b16 %v177, %v176
    %v197 = vpack.c.b16 %v179, %v178
    %v198 = vpack.c.b16 %v181, %v180
    %v199 = vpack.c.b16 %v183, %v182
    %v232 = vunpack.c.l.b16 %v100
    %v233 = vunpack.c.l.b16 %v101
    %v234 = vunpack.c.l.b16 %v102
    %v235 = vunpack.c.l.b16 %v103
    %v236 = vunpack.c.l.b16 %v104
    %v237 = vunpack.c.l.b16 %v105
    %v238 = vunpack.c.l.b16 %v106
    %v239 = vunpack.c.l.b16 %v107
    %v240 = vunpack.c.l.b16 %v108
    %v241 = vunpack.c.l.b16 %v109
    %v242 = vunpack.c.l.b16 %v110
    %v243 = vunpack.c.l.b16 %v111
    %v244 = vunpack.c.l.b16 %v112
    %v245 = vunpack.c.l.b16 %v113
    %v246 = vunpack.c.l.b16 %v114
    %v247 = vunpack.c.l.b16 %v115
    %v248 = vpack.c.b16 %v233, %v232
    %v249 = vpack.c.b16 %v235, %v234
    %v250 = vpack.c.b16 %v237, %v236
    %v251 = vpack.c.b16 %v239, %v238
    %v252 = vpack.c.b16 %v241, %v240
    %v253 = vpack.c.b16 %v243, %v242
    %v254 = vpack.c.b16 %v245, %v244
    %v255 = vpack.c.b16 %v247, %v246
    %264 = vmatpush.bf16.msra.mxu0 %v255
    %265 = vmatpush.bf16.msra.mxu0 %v254
    %266 = vmatpush.bf16.msra.mxu0 %v253
    %267 = vmatpush.bf16.msra.mxu0 %v252
    %268 = vmatpush.bf16.msra.mxu0 %v251
    %269 = vmatpush.bf16.msra.mxu0 %v250
    %270 = vmatpush.bf16.msra.mxu0 %v249
    %271 = vmatpush.bf16.msra.mxu0 %v248
    %272 = vmatmul.bf16.gmra.mxu0 %v184
    %v273 = vpop.f32.mrf.mxu0
    %v274 = vadd.f32 %v118, %v273
    %v275 = vpop.f32.mrf.mxu0
    %v276 = vadd.f32 %v118, %v275
    %277 = vmatmul.bf16.gmra.mxu0 %v185
    %v278 = vpop.f32.mrf.mxu0
    %v279 = vadd.f32 %v118, %v278
    %v280 = vpop.f32.mrf.mxu0
    %v281 = vadd.f32 %v118, %v280
    %282 = vmatmul.bf16.gmra.mxu0 %v186
    %v283 = vpop.f32.mrf.mxu0
    %v284 = vadd.f32 %v118, %v283
    %v285 = vpop.f32.mrf.mxu0
    %v286 = vadd.f32 %v118, %v285
    %287 = vmatmul.bf16.gmra.mxu0 %v187
    %v288 = vpop.f32.mrf.mxu0
    %v289 = vadd.f32 %v118, %v288
    %v290 = vpop.f32.mrf.mxu0
    %v291 = vadd.f32 %v118, %v290
    %292 = vmatmul.bf16.gmra.mxu0 %v188
    %v293 = vpop.f32.mrf.mxu0
    %v294 = vadd.f32 %v118, %v293
    %v295 = vpop.f32.mrf.mxu0
    %v296 = vadd.f32 %v118, %v295
    %297 = vmatmul.bf16.gmra.mxu0 %v189
    %v298 = vpop.f32.mrf.mxu0
    %v299 = vadd.f32 %v118, %v298
    %v300 = vpop.f32.mrf.mxu0
    %v301 = vadd.f32 %v118, %v300
    %302 = vmatmul.bf16.gmra.mxu0 %v190
    %v303 = vpop.f32.mrf.mxu0
    %v304 = vadd.f32 %v118, %v303
    %v305 = vpop.f32.mrf.mxu0
    %v306 = vadd.f32 %v118, %v305
    %307 = vmatmul.bf16.gmra.mxu0 %v191
    %v308 = vpop.f32.mrf.mxu0
    %v309 = vadd.f32 %v118, %v308
    %v310 = vpop.f32.mrf.mxu0
    %v311 = vadd.f32 %v118, %v310
    %312 = vmatmul.bf16.gmra.mxu0 %v192
    %v313 = vpop.f32.mrf.mxu0
    %v314 = vadd.f32 %v118, %v313
    %v315 = vpop.f32.mrf.mxu0
    %v316 = vadd.f32 %v118, %v315
    %317 = vmatmul.bf16.gmra.mxu0 %v193
    %v318 = vpop.f32.mrf.mxu0
    %v319 = vadd.f32 %v118, %v318
    %v320 = vpop.f32.mrf.mxu0
    %v321 = vadd.f32 %v118, %v320
    %322 = vmatmul.bf16.gmra.mxu0 %v194
    %v323 = vpop.f32.mrf.mxu0
    %v324 = vadd.f32 %v118, %v323
    %v325 = vpop.f32.mrf.mxu0
    %v326 = vadd.f32 %v118, %v325
    %327 = vmatmul.bf16.gmra.mxu0 %v195
    %v328 = vpop.f32.mrf.mxu0
    %v329 = vadd.f32 %v118, %v328
    %v330 = vpop.f32.mrf.mxu0
    %v331 = vadd.f32 %v118, %v330
    %332 = vmatmul.bf16.gmra.mxu0 %v196
    %v333 = vpop.f32.mrf.mxu0
    %v334 = vadd.f32 %v118, %v333
    %v335 = vpop.f32.mrf.mxu0
    %v336 = vadd.f32 %v118, %v335
    %337 = vmatmul.bf16.gmra.mxu0 %v197
    %v338 = vpop.f32.mrf.mxu0
    %v339 = vadd.f32 %v118, %v338
    %v340 = vpop.f32.mrf.mxu0
    %v341 = vadd.f32 %v118, %v340
    %342 = vmatmul.bf16.gmra.mxu0 %v198
    %v343 = vpop.f32.mrf.mxu0
    %v344 = vadd.f32 %v118, %v343
    %v345 = vpop.f32.mrf.mxu0
    %v346 = vadd.f32 %v118, %v345
    %347 = vmatmul.bf16.gmra.mxu0 %v199
    %v348 = vpop.f32.mrf.mxu0
    %v349 = vadd.f32 %v118, %v348
    %v350 = vpop.f32.mrf.mxu0
    %v351 = vadd.f32 %v118, %v350
    %352 = vdwg.mxu0
    %v353 = vmax.f32 %v274, 0.0
    %v354 = vmax.f32 %v276, 0.0
    %v355 = vmax.f32 %v279, 0.0
    %v356 = vmax.f32 %v281, 0.0
    %v357 = vmax.f32 %v284, 0.0
    %v358 = vmax.f32 %v286, 0.0
    %v359 = vmax.f32 %v289, 0.0
    %v360 = vmax.f32 %v291, 0.0
    %v361 = vmax.f32 %v294, 0.0
    %v362 = vmax.f32 %v296, 0.0
    %v363 = vmax.f32 %v299, 0.0
    %v364 = vmax.f32 %v301, 0.0
    %v365 = vmax.f32 %v304, 0.0
    %v366 = vmax.f32 %v306, 0.0
    %v367 = vmax.f32 %v309, 0.0
    %v368 = vmax.f32 %v311, 0.0
    %v369 = vmax.f32 %v314, 0.0
    %v370 = vmax.f32 %v316, 0.0
    %v371 = vmax.f32 %v319, 0.0
    %v372 = vmax.f32 %v321, 0.0
    %v373 = vmax.f32 %v324, 0.0
    %v374 = vmax.f32 %v326, 0.0
    %v375 = vmax.f32 %v329, 0.0
    %v376 = vmax.f32 %v331, 0.0
    %v377 = vmax.f32 %v334, 0.0
    %v378 = vmax.f32 %v336, 0.0
    %v379 = vmax.f32 %v339, 0.0
    %v380 = vmax.f32 %v341, 0.0
    %v381 = vmax.f32 %v344, 0.0
    %v382 = vmax.f32 %v346, 0.0
    %v383 = vmax.f32 %v349, 0.0
    %v384 = vmax.f32 %v351, 0.0
    %v385 = vpack.c.bf16 %v354, %v353
    %v386 = vpack.c.bf16 %v356, %v355
    %v387 = vpack.c.bf16 %v358, %v357
    %v388 = vpack.c.bf16 %v360, %v359
    %v389 = vpack.c.bf16 %v362, %v361
    %v390 = vpack.c.bf16 %v364, %v363
    %v391 = vpack.c.bf16 %v366, %v365
    %v392 = vpack.c.bf16 %v368, %v367
    %v393 = vpack.c.bf16 %v370, %v369
    %v394 = vpack.c.bf16 %v372, %v371
    %v395 = vpack.c.bf16 %v374, %v373
    %v396 = vpack.c.bf16 %v376, %v375
    %v397 = vpack.c.bf16 %v378, %v377
    %v398 = vpack.c.bf16 %v380, %v379
    %v399 = vpack.c.bf16 %v382, %v381
    %v400 = vpack.c.bf16 %v384, %v383
    %v401 = vld [vmem:[#allocation7] sm:$0xf]
    %v402 = vld [vmem:[#allocation7 + $0x4] sm:$0xf]
    %v403 = vld [vmem:[#allocation7 + $0x8] sm:$0xf]
    %v404 = vld [vmem:[#allocation7 + $0xc] sm:$0xf]
    %v405 = vld [vmem:[#allocation7 + $0x10] sm:$0xf]
    %v406 = vld [vmem:[#allocation7 + $0x14] sm:$0xf]
    %v407 = vld [vmem:[#allocation7 + $0x18] sm:$0xf]
    %v408 = vld [vmem:[#allocation7 + $0x1c] sm:$0xf]
    %v409 = vld [vmem:[#allocation7 + $0x20] sm:$0xf]
    %v410 = vld [vmem:[#allocation7 + $0x24] sm:$0xf]
    %v411 = vld [vmem:[#allocation7 + $0x28] sm:$0xf]
    %v412 = vld [vmem:[#allocation7 + $0x2c] sm:$0xf]
    %v413 = vld [vmem:[#allocation7 + $0x30] sm:$0xf]
    %v414 = vld [vmem:[#allocation7 + $0x34] sm:$0xf]
    %v415 = vld [vmem:[#allocation7 + $0x38] sm:$0xf]
    %v416 = vld [vmem:[#allocation7 + $0x3c] sm:$0xf]
    %v417 = vld [vmem:[%s4] sm:$0x1]
    %v419 = vperm.slane %v417, 0
    %v437 = vunpack.c.l.b16 %v401
    %v438 = vunpack.c.l.b16 %v402
    %v439 = vunpack.c.l.b16 %v403
    %v440 = vunpack.c.l.b16 %v404
    %v441 = vunpack.c.l.b16 %v405
    %v442 = vunpack.c.l.b16 %v406
    %v443 = vunpack.c.l.b16 %v407
    %v444 = vunpack.c.l.b16 %v408
    %v445 = vunpack.c.l.b16 %v409
    %v446 = vunpack.c.l.b16 %v410
    %v447 = vunpack.c.l.b16 %v411
    %v448 = vunpack.c.l.b16 %v412
    %v449 = vunpack.c.l.b16 %v413
    %v450 = vunpack.c.l.b16 %v414
    %v451 = vunpack.c.l.b16 %v415
    %v452 = vunpack.c.l.b16 %v416
    %v453 = vpack.c.b16 %v438, %v437
    %v454 = vpack.c.b16 %v440, %v439
    %v455 = vpack.c.b16 %v442, %v441
    %v456 = vpack.c.b16 %v444, %v443
    %v457 = vpack.c.b16 %v446, %v445
    %v458 = vpack.c.b16 %v448, %v447
    %v459 = vpack.c.b16 %v450, %v449
    %v460 = vpack.c.b16 %v452, %v451
    %469 = vmatpush.bf16.msra.mxu0 %v460
    %470 = vmatpush.bf16.msra.mxu0 %v459
    %471 = vmatpush.bf16.msra.mxu0 %v458
    %472 = vmatpush.bf16.msra.mxu0 %v457
    %473 = vmatpush.bf16.msra.mxu0 %v456
    %474 = vmatpush.bf16.msra.mxu0 %v455
    %475 = vmatpush.bf16.msra.mxu0 %v454
    %476 = vmatpush.bf16.msra.mxu0 %v453
    %477 = vmatmul.bf16.gmra.mxu0 %v385
    %v478 = vpop.f32.mrf.mxu0
    %v479 = vadd.f32 %v419, %v478
    %v480 = vpop.f32.mrf.mxu0
    %v481 = vadd.f32 %v419, %v480
    %482 = vmatmul.bf16.gmra.mxu0 %v386
    %v483 = vpop.f32.mrf.mxu0
    %v484 = vadd.f32 %v419, %v483
    %v485 = vpop.f32.mrf.mxu0
    %v486 = vadd.f32 %v419, %v485
    %487 = vmatmul.bf16.gmra.mxu0 %v387
    %v488 = vpop.f32.mrf.mxu0
    %v489 = vadd.f32 %v419, %v488
    %v490 = vpop.f32.mrf.mxu0
    %v491 = vadd.f32 %v419, %v490
    %492 = vmatmul.bf16.gmra.mxu0 %v388
    %v493 = vpop.f32.mrf.mxu0
    %v494 = vadd.f32 %v419, %v493
    %v495 = vpop.f32.mrf.mxu0
    %v496 = vadd.f32 %v419, %v495
    %497 = vmatmul.bf16.gmra.mxu0 %v389
    %v498 = vpop.f32.mrf.mxu0
    %v499 = vadd.f32 %v419, %v498
    %v500 = vpop.f32.mrf.mxu0
    %v501 = vadd.f32 %v419, %v500
    %502 = vmatmul.bf16.gmra.mxu0 %v390
    %v503 = vpop.f32.mrf.mxu0
    %v504 = vadd.f32 %v419, %v503
    %v505 = vpop.f32.mrf.mxu0
    %v506 = vadd.f32 %v419, %v505
    %507 = vmatmul.bf16.gmra.mxu0 %v391
    %v508 = vpop.f32.mrf.mxu0
    %v509 = vadd.f32 %v419, %v508
    %v510 = vpop.f32.mrf.mxu0
    %v511 = vadd.f32 %v419, %v510
    %512 = vmatmul.bf16.gmra.mxu0 %v392
    %v513 = vpop.f32.mrf.mxu0
    %v514 = vadd.f32 %v419, %v513
    %v515 = vpop.f32.mrf.mxu0
    %v516 = vadd.f32 %v419, %v515
    %517 = vmatmul.bf16.gmra.mxu0 %v393
    %v518 = vpop.f32.mrf.mxu0
    %v519 = vadd.f32 %v419, %v518
    %v520 = vpop.f32.mrf.mxu0
    %v521 = vadd.f32 %v419, %v520
    %522 = vmatmul.bf16.gmra.mxu0 %v394
    %v523 = vpop.f32.mrf.mxu0
    %v524 = vadd.f32 %v419, %v523
    %v525 = vpop.f32.mrf.mxu0
    %v526 = vadd.f32 %v419, %v525
    %527 = vmatmul.bf16.gmra.mxu0 %v395
    %v528 = vpop.f32.mrf.mxu0
    %v529 = vadd.f32 %v419, %v528
    %v530 = vpop.f32.mrf.mxu0
    %v531 = vadd.f32 %v419, %v530
    %532 = vmatmul.bf16.gmra.mxu0 %v396
    %v533 = vpop.f32.mrf.mxu0
    %v534 = vadd.f32 %v419, %v533
    %v535 = vpop.f32.mrf.mxu0
    %v536 = vadd.f32 %v419, %v535
    %537 = vmatmul.bf16.gmra.mxu0 %v397
    %v538 = vpop.f32.mrf.mxu0
    %v539 = vadd.f32 %v419, %v538
    %v540 = vpop.f32.mrf.mxu0
    %v541 = vadd.f32 %v419, %v540
    %542 = vmatmul.bf16.gmra.mxu0 %v398
    %v543 = vpop.f32.mrf.mxu0
    %v544 = vadd.f32 %v419, %v543
    %v545 = vpop.f32.mrf.mxu0
    %v546 = vadd.f32 %v419, %v545
    %547 = vmatmul.bf16.gmra.mxu0 %v399
    %v548 = vpop.f32.mrf.mxu0
    %v549 = vadd.f32 %v419, %v548
    %v550 = vpop.f32.mrf.mxu0
    %v551 = vadd.f32 %v419, %v550
    %552 = vmatmul.bf16.gmra.mxu0 %v400
    %v553 = vpop.f32.mrf.mxu0
    %v554 = vadd.f32 %v419, %v553
    %v555 = vpop.f32.mrf.mxu0
    %v556 = vadd.f32 %v419, %v555
    %557 = vdwg.mxu0
    %558 = vst [vmem:[#allocation8] sm:$0xff] %v479
    %559 = vst [vmem:[#allocation8 + $0x8] sm:$0xff] %v481
    %560 = vst [vmem:[#allocation8 + $0x10] sm:$0xff] %v484
    %561 = vst [vmem:[#allocation8 + $0x18] sm:$0xff] %v486
    %562 = vst [vmem:[#allocation8 + $0x20] sm:$0xff] %v489
    %563 = vst [vmem:[#allocation8 + $0x28] sm:$0xff] %v491
    %564 = vst [vmem:[#allocation8 + $0x30] sm:$0xff] %v494
    %565 = vst [vmem:[#allocation8 + $0x38] sm:$0xff] %v496
    %566 = vst [vmem:[#allocation8 + $0x40] sm:$0xff] %v499
    %567 = vst [vmem:[#allocation8 + $0x48] sm:$0xff] %v501
    %568 = vst [vmem:[#allocation8 + $0x50] sm:$0xff] %v504
    %569 = vst [vmem:[#allocation8 + $0x58] sm:$0xff] %v506
    %570 = vst [vmem:[#allocation8 + $0x60] sm:$0xff] %v509
    %571 = vst [vmem:[#allocation8 + $0x68] sm:$0xff] %v511
    %572 = vst [vmem:[#allocation8 + $0x70] sm:$0xff] %v514
    %573 = vst [vmem:[#allocation8 + $0x78] sm:$0xff] %v516
    %574 = vst [vmem:[#allocation8 + $0x80] sm:$0xff] %v519
    %575 = vst [vmem:[#allocation8 + $0x88] sm:$0xff] %v521
    %576 = vst [vmem:[#allocation8 + $0x90] sm:$0xff] %v524
    %577 = vst [vmem:[#allocation8 + $0x98] sm:$0xff] %v526
    %578 = vst [vmem:[#allocation8 + $0xa0] sm:$0xff] %v529
    %579 = vst [vmem:[#allocation8 + $0xa8] sm:$0xff] %v531
    %580 = vst [vmem:[#allocation8 + $0xb0] sm:$0xff] %v534
    %581 = vst [vmem:[#allocation8 + $0xb8] sm:$0xff] %v536
    %582 = vst [vmem:[#allocation8 + $0xc0] sm:$0xff] %v539
    %583 = vst [vmem:[#allocation8 + $0xc8] sm:$0xff] %v541
    %584 = vst [vmem:[#allocation8 + $0xd0] sm:$0xff] %v544
    %585 = vst [vmem:[#allocation8 + $0xd8] sm:$0xff] %v546
    %586 = vst [vmem:[#allocation8 + $0xe0] sm:$0xff] %v549
    %587 = vst [vmem:[#allocation8 + $0xe8] sm:$0xff] %v551
    %588 = vst [vmem:[#allocation8 + $0xf0] sm:$0xff] %v554
    %589 = vst [vmem:[#allocation8 + $0xf8] sm:$0xff] %v556
    // Predicated region
    $region34: #{tpu_custom_call.1} parent=1 // pred_check
      _
    $region35: #{tpu_custom_call.1} parent=1 // pred_check_branch
      %591 = sbr.rel (0) target = $region37
    $region36: #{tpu_custom_call.1} parent=1 // pred_region
      %593 = vsyncadd [#allocation4], 0
      %s594 = sshll.u32 [#allocation8], 4
      %s595 = int_to_ptr.vmem [resolvable:$true] %s594
      %s596 = sshll.u32 %s5, 4
      %s597 = int_to_ptr.hbm [resolvable:$true] %s596
      %602 = dma.vmem_to_hbm [thread:$0]  %s595, 4096, %s597, [#allocation4], 128, 128, 8
    $region37: #{tpu_custom_call.1} parent=1 // pred_fallthru
      _
    // Predicated region
    $region38: #{tpu_custom_call.1} parent=1 // pred_check
      _
    $region39: #{tpu_custom_call.1} parent=1 // pred_check_branch
      %604 = sbr.rel (0) target = $region41
    $region40: #{tpu_custom_call.1} parent=1 // pred_region
      %606 = dma.done [#allocation4], 4096
    $region41: #{tpu_custom_call.1} parent=1 // pred_fallthru
      _
    %607 = vsyncpa [#allocation3], 1
    %608 = vsyncpa [#allocation6], 1
    %609 = vsyncpa [#allocation4], 1

</llo_original>
